<compile_context>
chip_gen: v6e
topology: v6e:2x2x1
jax: 0.10.0
libtpu: 0.0.40
codegen_flags: <defaults>
</compile_context>

<pallas_src>
import jax
import jax.numpy as jnp
from jax.experimental import pallas as pl
from jax.experimental.pallas import tpu as pltpu

LANE = 128
SUB = 8            # f32 sublanes -> one-vreg (8, 128) accumulator


def _chip_defaults():
    """(num_splits, block_rows_max, vmem_limit_bytes) per TPU generation."""
    try:
        kind = jax.devices()[0].device_kind.lower()
    except Exception:
        kind = ""
    if "7" in kind:                        # v7x: 2 TC/chip, 64 MiB VMEM/TC
        return 2, 4096, 32 * 1024 * 1024
    if "v6" in kind or "6 lite" in kind:   # v6e: 1 TC, 128 MiB VMEM
        return 1, 8192, 64 * 1024 * 1024
    if "v5" in kind or "5 lite" in kind:   # v5e: 1 TC, HBM-bound
        return 1, 4096, 48 * 1024 * 1024
    return 1, 2048, 32 * 1024 * 1024       # unknown: conservative


def _bce_elems(x, y, binary_target):
    """Per-element BCE loss with PyTorch's clamp of the log terms at -100."""
    if binary_target:
        # y known to be exactly 0 or 1: one log instead of two.
        return -jnp.maximum(jnp.log(jnp.where(y > 0.5, x, 1.0 - x)), -100.0)
    log_x = jnp.maximum(jnp.log(x), -100.0)
    log_1mx = jnp.maximum(jnp.log1p(-x), -100.0)
    # -(y*log_x + (1-y)*log_1mx), refactored to save a mul + sub.
    return -(log_1mx + y * (log_x - log_1mx))


def _make_kernel(rows_total, block_rows, bps, num_blocks, mask_partial,
                 binary_target):
    n_chunks = block_rows // SUB

    def kernel(x_ref, t_ref, m_ref, o_ref):
        p = pl.program_id(0)      # "parallel" axis (TensorCore shard)
        k = pl.program_id(1)      # "arbitrary" reduction axis

        @pl.when(k == 0)
        def _init():
            o_ref[...] = jnp.zeros_like(o_ref)

        def _loss():
            x = x_ref[...].astype(jnp.float32)
            # fused mask multiply (BCE target = target * mask)
            y = t_ref[...].astype(jnp.float32) * m_ref[...].astype(jnp.float32)
            return _bce_elems(x, y, binary_target)

        def _accum(loss):
            # Fold (block_rows, 128) into one vreg (8, 128): pure VALU adds,
            # no large-accumulator VMEM read-modify-write in the hot loop.
            o_ref[...] += loss.reshape(n_chunks, SUB, LANE).sum(axis=0)

        if mask_partial:
            is_last = (p * bps + k) == (num_blocks - 1)

            @pl.when(jnp.logical_not(is_last))
            def _full_block():
                _accum(_loss())

            @pl.when(is_last)
            def _partial_block():
                row = (num_blocks - 1) * block_rows + jax.lax.broadcasted_iota(
                    jnp.int32, (block_rows, LANE), 0)
                _accum(jnp.where(row < rows_total, _loss(), 0.0))
        else:
            _accum(_loss())

    return kernel


def masked_bce(inp, target, mask, *, binary_target=False,
               block_rows_max=None, num_splits=None, vmem_limit_bytes=None):
    """BCELoss(input, target * mask), mean reduction — MaskedBCE.forward."""
    cfg_splits, cfg_block_rows, cfg_vmem = _chip_defaults()
    block_rows_max = cfg_block_rows if block_rows_max is None else block_rows_max
    num_splits = cfg_splits if num_splits is None else num_splits
    vmem_limit_bytes = cfg_vmem if vmem_limit_bytes is None else vmem_limit_bytes

    n = inp.size
    x = inp.reshape(-1)
    t = target.reshape(-1)
    m = mask.reshape(-1)

    # Main region: whole 128-lane rows, rounded down to a multiple of SUB rows
    # so the in-kernel (n_chunks, 8, 128) fold is always exact.
    rows = (n // LANE) // SUB * SUB
    n_main = rows * LANE

    # Remainder (< (SUB+1)*128 elements): plain JAX, no full-array jnp.pad.
    if n_main < n:
        tail_sum = jnp.sum(_bce_elems(
            x[n_main:].astype(jnp.float32),
            t[n_main:].astype(jnp.float32) * m[n_main:].astype(jnp.float32),
            binary_target))
    else:
        tail_sum = jnp.float32(0.0)

    if rows == 0:
        return tail_sum / jnp.float32(n)

    # Keep native dtypes in HBM (bf16 / int8 target & mask stay narrow);
    # the kernel upcasts to f32 inside VMEM.
    x2 = x[:n_main].reshape(rows, LANE)
    t2 = t[:n_main].reshape(rows, LANE)
    m2 = m[:n_main].reshape(rows, LANE)

    block_rows = min(block_rows_max, rows)
    num_blocks = pl.cdiv(rows, block_rows)
    mask_partial = (rows % block_rows) != 0     # only the last block is partial

    # Shard row-blocks across TensorCores only when it costs nothing: the
    # split must divide num_blocks exactly (no clamped-duplicate DMA step).
    num_splits = min(num_splits, num_blocks)
    if num_blocks % num_splits != 0:
        num_splits = 1
    bps = num_blocks // num_splits              # reduction steps per split

    kernel = _make_kernel(rows, block_rows, bps, num_blocks, mask_partial,
                          binary_target)

    def in_map(p, k):
        return (p * bps + k, 0)

    partials = pl.pallas_call(
        kernel,
        out_shape=jax.ShapeDtypeStruct((num_splits * SUB, LANE), jnp.float32),
        grid_spec=pltpu.PrefetchScalarGridSpec(
            num_scalar_prefetch=0,
            grid=(num_splits, bps),
            in_specs=[
                pl.BlockSpec((block_rows, LANE), in_map),
                pl.BlockSpec((block_rows, LANE), in_map),
                pl.BlockSpec((block_rows, LANE), in_map),
            ],
            # Output block index depends only on p -> resident across k and
            # serves as the per-split accumulator.
            out_specs=pl.BlockSpec((SUB, LANE), lambda p, k: (p, 0)),
        ),
        compiler_params=pltpu.CompilerParams(
            dimension_semantics=("parallel", "arbitrary"),
            vmem_limit_bytes=vmem_limit_bytes,
        ),
    )(x2, t2, m2)

    return (jnp.sum(partials) + tail_sum) / jnp.float32(n)


def _reference(inp, target, mask):
    x = inp.astype(jnp.float32)
    y = target.astype(jnp.float32) * mask.astype(jnp.float32)
    log_x = jnp.maximum(jnp.log(x), -100.0)
    log_1mx = jnp.maximum(jnp.log1p(-x), -100.0)
    return jnp.mean(-(y * log_x + (1.0 - y) * log_1mx))


# TODO(synk): backward pass (autograd of nn.BCELoss) is not implemented; only
# the forward loss value is computed here.

if __name__ == "__main__":
    def make_inputs(seed, shape):
        k1, k2, k3 = jax.random.split(jax.random.PRNGKey(seed), 3)
        # input must lie in (0, 1) for BCE; use a squashed uniform.
        inp = jax.random.uniform(k1, shape, jnp.float32, 0.01, 0.99)
        target = (jax.random.uniform(k2, shape) > 0.5).astype(jnp.float32)
        mask = (jax.random.uniform(k3, shape) > 0.3).astype(jnp.float32)
        return inp, target, mask

    # Primary small case (NCHW, same convention as the PyTorch module).
    inp, target, mask = make_inputs(0, (2, 4, 16, 16))
    loss = masked_bce(inp, target, mask)
    jax.block_until_ready(loss)
    ref = _reference(inp, target, mask)
    assert jnp.allclose(loss, ref, rtol=3e-5, atol=1e-6), (loss, ref)

    # Secondary case: forces multi-block grid, 2-way split, partial last block
    # and JAX tail path deterministically on any TPU generation.
    inp2, target2, mask2 = make_inputs(1, (2, 4, 100, 97))
    loss2 = masked_bce(inp2, target2, mask2, block_rows_max=512, num_splits=2)
    jax.block_until_ready(loss2)
    ref2 = _reference(inp2, target2, mask2)
    assert jnp.allclose(loss2, ref2, rtol=3e-5, atol=1e-6), (loss2, ref2)

    # Binary-target fast path (target * mask is exactly {0,1} here).
    loss3 = masked_bce(inp, target, mask, binary_target=True)
    jax.block_until_ready(loss3)
    assert jnp.allclose(loss3, ref, rtol=3e-5, atol=1e-6), (loss3, ref)

    print("KERNEL_OK")
</pallas_src>

<mosaic_0001>
module attributes {stable_mosaic.version = 11 : i64} {
  func.func @kernel(%arg0: i32, %arg1: i32, %arg2: memref<16x128xf32, #tpu.memory_space<vmem>>, %arg3: memref<16x128xf32, #tpu.memory_space<vmem>>, %arg4: memref<16x128xf32, #tpu.memory_space<vmem>>, %arg5: memref<8x128xf32, #tpu.memory_space<vmem>>) attributes {dimension_semantics = [#tpu.dimension_semantics<parallel>, #tpu.dimension_semantics<arbitrary>], iteration_bounds = array<i64: 1, 1>, scalar_prefetch = 0 : i64, scratch_operands = 0 : i64, tpu.core_type = #tpu.core_type<tc>, window_params = [{transform_indices = @transform_0, window_bounds = array<i64: 16, 128>}, {transform_indices = @transform_1, window_bounds = array<i64: 16, 128>}, {transform_indices = @transform_2, window_bounds = array<i64: 16, 128>}, {transform_indices = @transform_3, window_bounds = array<i64: 8, 128>}]} {
    %c0_i32 = arith.constant 0 : i32
    %0 = arith.cmpi eq, %arg1, %c0_i32 : i32
    %1 = arith.extui %0 : i1 to i32
    %c0_i32_0 = arith.constant 0 : i32
    %2 = arith.cmpi ne, %1, %c0_i32_0 : i32
    scf.if %2 {
      %cst_14 = arith.constant 0.000000e+00 : f32
      %25 = vector.broadcast %cst_14 : f32 to vector<8x128xf32>
      %c0_15 = arith.constant 0 : index
      %c0_16 = arith.constant 0 : index
      %26 = vector.load %arg5[%c0_15, %c0_16] : memref<8x128xf32, #tpu.memory_space<vmem>>, vector<8x128xf32>
      tpu.vector_store %arg5[%c0_15, %c0_16], %25 {strides = array<i32>} : memref<8x128xf32, #tpu.memory_space<vmem>>, vector<8x128xf32>,
    } else {
    }
    %c0 = arith.constant 0 : index
    %c0_1 = arith.constant 0 : index
    %3 = vector.load %arg2[%c0, %c0_1] : memref<16x128xf32, #tpu.memory_space<vmem>>, vector<16x128xf32>
    %c0_2 = arith.constant 0 : index
    %c0_3 = arith.constant 0 : index
    %4 = vector.load %arg3[%c0_2, %c0_3] : memref<16x128xf32, #tpu.memory_space<vmem>>, vector<16x128xf32>
    %c0_4 = arith.constant 0 : index
    %c0_5 = arith.constant 0 : index
    %5 = vector.load %arg4[%c0_4, %c0_5] : memref<16x128xf32, #tpu.memory_space<vmem>>, vector<16x128xf32>
    %6 = arith.mulf %4, %5 : vector<16x128xf32>
    %7 = math.log %3 : vector<16x128xf32>
    %cst = arith.constant -1.000000e+02 : f32
    %8 = vector.broadcast %cst : f32 to vector<16x128xf32>
    %9 = arith.maximumf %7, %8 : vector<16x128xf32>
    %cst_6 = arith.constant 0.000000e+00 : f32
    %10 = vector.broadcast %cst_6 : f32 to vector<16x128xf32>
    %11 = arith.subf %10, %3 : vector<16x128xf32>
    %12 = math.log1p %11 : vector<16x128xf32>
    %cst_7 = arith.constant -1.000000e+02 : f32
    %13 = vector.broadcast %cst_7 : f32 to vector<16x128xf32>
    %14 = arith.maximumf %12, %13 : vector<16x128xf32>
    %15 = arith.subf %9, %14 : vector<16x128xf32>
    %16 = arith.mulf %6, %15 : vector<16x128xf32>
    %17 = arith.addf %14, %16 : vector<16x128xf32>
    %cst_8 = arith.constant 0.000000e+00 : f32
    %18 = vector.broadcast %cst_8 : f32 to vector<16x128xf32>
    %19 = arith.subf %18, %17 : vector<16x128xf32>
    %c0_9 = arith.constant 0 : index
    %c0_10 = arith.constant 0 : index
    %20 = vector.load %arg5[%c0_9, %c0_10] : memref<8x128xf32, #tpu.memory_space<vmem>>, vector<8x128xf32>
    %21 = vector.shape_cast %19 : vector<16x128xf32> to vector<2x8x128xf32>
    %cst_11 = arith.constant dense<0.000000e+00> : vector<8x128xf32>
    %22 = vector.multi_reduction <add>, %21, %cst_11 [0] : vector<2x8x128xf32> to vector<8x128xf32>
    %23 = arith.addf %20, %22 : vector<8x128xf32>
    %c0_12 = arith.constant 0 : index
    %c0_13 = arith.constant 0 : index
    %24 = vector.load %arg5[%c0_12, %c0_13] : memref<8x128xf32, #tpu.memory_space<vmem>>, vector<8x128xf32>
    tpu.vector_store %arg5[%c0_12, %c0_13], %23 {strides = array<i32>} : memref<8x128xf32, #tpu.memory_space<vmem>>, vector<8x128xf32>,
    return
  }
  func.func @transform_0(%arg0: i32, %arg1: i32) -> (i32, i32) {
    %c1_i32 = arith.constant 1 : i32
    %0 = arith.muli %arg0, %c1_i32 : i32
    %1 = arith.addi %0, %arg1 : i32
    %c0_i32 = arith.constant 0 : i32
    %c0_i32_0 = arith.constant 0 : i32
    return %1, %c0_i32 : i32, i32
  }
  func.func @transform_1(%arg0: i32, %arg1: i32) -> (i32, i32) {
    %c1_i32 = arith.constant 1 : i32
    %0 = arith.muli %arg0, %c1_i32 : i32
    %1 = arith.addi %0, %arg1 : i32
    %c0_i32 = arith.constant 0 : i32
    %c0_i32_0 = arith.constant 0 : i32
    return %1, %c0_i32 : i32, i32
  }
  func.func @transform_2(%arg0: i32, %arg1: i32) -> (i32, i32) {
    %c1_i32 = arith.constant 1 : i32
    %0 = arith.muli %arg0, %c1_i32 : i32
    %1 = arith.addi %0, %arg1 : i32
    %c0_i32 = arith.constant 0 : i32
    %c0_i32_0 = arith.constant 0 : i32
    return %1, %c0_i32 : i32, i32
  }
  func.func @transform_3(%arg0: i32, %arg1: i32) -> (i32, i32) {
    %c0_i32 = arith.constant 0 : i32
    %c0_i32_0 = arith.constant 0 : i32
    return %arg0, %c0_i32 : i32, i32
  }
}

</mosaic_0001>

<llo_original>
// kernel: tpu_custom_call.1
$region0: #{tpu_custom_call.1}
  #allocation0 [shape = 'u32[]', space=smem, size = 0x4, offset = 0x4, fixed_abs, tag = 'smem constant byte address 0x4 - core index']
  #allocation1 [shape = 'u32[144,128]{1,0:T(1,128)}', space=vmem, size = 0x12000, scoped, tag = 'internal scratch']
  %s0 = inlined_call_operand.hbm [shape: f32[16,128], index: 0, kind: input, shape index: {}]
  %s1 = inlined_call_operand.hbm [shape: f32[16,128], index: 1, kind: input, shape index: {}]
  %s2 = inlined_call_operand.hbm [shape: f32[16,128], index: 2, kind: input, shape index: {}]
  %s3 = inlined_call_operand.hbm [shape: f32[8,128], index: 3, kind: output, shape index: {}]
  %s4 = sld [smem:[#allocation0]]
  $region38: #{tpu_custom_call.1} parent=0
    _
  %s6 = ssub.s32 1, %s4
  %s7 = scalar_select 0, %s6, %s4
  $region1: #{tpu_custom_call.1} parent=0
    #allocation2 [shape = 'u8[8192]{0}', space=vmem, size = 0x2000, scoped, tag = 'input window, operand 0, single buffered']
    #allocation3 [shape = 's32[1]{0}', space=sflag, size = 0x4, scoped, tag = 'scoped memory for tpu_custom_call.1']
    #allocation4 [shape = 's32[1]{0}', space=sflag, size = 0x4, scoped, tag = 'scoped memory for tpu_custom_call.1']
    #allocation5 [shape = 'u8[8192]{0}', space=vmem, size = 0x2000, scoped, tag = 'input window, operand 1, single buffered']
    #allocation6 [shape = 's32[1]{0}', space=sflag, size = 0x4, scoped, tag = 'scoped memory for tpu_custom_call.1']
    #allocation7 [shape = 'u8[8192]{0}', space=vmem, size = 0x2000, scoped, tag = 'input window, operand 2, single buffered']
    #allocation8 [shape = 'u8[4096]{0}', space=vmem, size = 0x1000, scoped, tag = 'output window, operand 0, single buffered']
    %8 = vsyncpa [#allocation3], 0
    %9 = vsyncpa [#allocation6], 0
    %10 = vsyncpa [#allocation4], 0
    // Predicated region
    $region2: #{tpu_custom_call.1} parent=1 // pred_check
      _
    $region3: #{tpu_custom_call.1} parent=1 // pred_check_branch
      %12 = sbr.rel (0) target = $region5
    $region4: #{tpu_custom_call.1} parent=1 // pred_region
      %s13 = sadd.s32 0, 0
      %s14 = smul.u32 2, %s13
      %s16 = ssub.s32 256, 256
      %17 = vsyncadd [#allocation3], %s16
      %s18 = smul.addr %s14, 128
      %s19 = scalar_lea.hbm %s0, %s18
      %s20 = sshll.u32 [#allocation2], 4
      %s21 = int_to_ptr.vmem [resolvable:$true] %s20
      %26 = dma.hbm_to_vmem [thread:$0]  %s19, 256, %s21, [#allocation3], 128, 128, 8
    $region5: #{tpu_custom_call.1} parent=1 // pred_fallthru
      _
    // Predicated region
    $region6: #{tpu_custom_call.1} parent=1 // pred_check
      _
    $region7: #{tpu_custom_call.1} parent=1 // pred_check_branch
      %28 = sbr.rel (0) target = $region9
    $region8: #{tpu_custom_call.1} parent=1 // pred_region
      %s29 = sadd.s32 0, 0
      %s30 = smul.u32 2, %s29
      %s32 = ssub.s32 256, 256
      %33 = vsyncadd [#allocation6], %s32
      %s34 = smul.addr %s30, 128
      %s35 = scalar_lea.hbm %s1, %s34
      %s36 = sshll.u32 [#allocation5], 4
      %s37 = int_to_ptr.vmem [resolvable:$true] %s36
      %42 = dma.hbm_to_vmem [thread:$0]  %s35, 256, %s37, [#allocation6], 128, 128, 8
    $region9: #{tpu_custom_call.1} parent=1 // pred_fallthru
      _
    // Predicated region
    $region10: #{tpu_custom_call.1} parent=1 // pred_check
      _
    $region11: #{tpu_custom_call.1} parent=1 // pred_check_branch
      %44 = sbr.rel (0) target = $region13
    $region12: #{tpu_custom_call.1} parent=1 // pred_region
      %s45 = sadd.s32 0, 0
      %s46 = smul.u32 2, %s45
      %s48 = ssub.s32 256, 256
      %49 = vsyncadd [#allocation6], %s48
      %s50 = smul.addr %s46, 128
      %s51 = scalar_lea.hbm %s2, %s50
      %s52 = sshll.u32 [#allocation7], 4
      %s53 = int_to_ptr.vmem [resolvable:$true] %s52
      %58 = dma.hbm_to_vmem [thread:$0]  %s51, 256, %s53, [#allocation6], 128, 128, 8
    $region13: #{tpu_custom_call.1} parent=1 // pred_fallthru
      _
    // Predicated region
    $region14: #{tpu_custom_call.1} parent=1 // pred_check
      _
    $region15: #{tpu_custom_call.1} parent=1 // pred_check_branch
      %60 = sbr.rel (0) target = $region17
    $region16: #{tpu_custom_call.1} parent=1 // pred_region
      %61 = dma.done [#allocation3], 256
    $region17: #{tpu_custom_call.1} parent=1 // pred_fallthru
      _
    // Predicated region
    $region18: #{tpu_custom_call.1} parent=1 // pred_check
      _
    $region19: #{tpu_custom_call.1} parent=1 // pred_check_branch
      %63 = sbr.rel (0) target = $region21
    $region20: #{tpu_custom_call.1} parent=1 // pred_region
      %64 = dma.done [#allocation6], 256
    $region21: #{tpu_custom_call.1} parent=1 // pred_fallthru
      _
    // Predicated region
    $region22: #{tpu_custom_call.1} parent=1 // pred_check
      _
    $region23: #{tpu_custom_call.1} parent=1 // pred_check_branch
      %66 = sbr.rel (0) target = $region25
    $region24: #{tpu_custom_call.1} parent=1 // pred_region
      %67 = dma.done [#allocation6], 256
    $region25: #{tpu_custom_call.1} parent=1 // pred_fallthru
      _
    %s68 = sadd.s32 0, 0
    %s69 = smul.u32 2, %s68
    %s70 = sadd.s32 0, 0
    %s71 = smul.u32 2, %s70
    %s72 = sadd.s32 0, 0
    %s73 = smul.u32 2, %s72
    %p74 = scmp.eq.s32.totalorder 0, 0
    // Predicated region
    $region26: #{tpu_custom_call.1} parent=1 // pred_check
      %p75 = pneg %p74
    $region27: #{tpu_custom_call.1} parent=1 // pred_check_branch
      %77 = sbr.rel (%p75) target = $region29
    $region28: #{tpu_custom_call.1} parent=1 // pred_region
      %78 = vst [vmem:[#allocation8] sm:$0xff] 0.0
    $region29: #{tpu_custom_call.1} parent=1 // pred_fallthru
      _
    %v79 = vld [vmem:[#allocation2] sm:$0xff]
    %v80 = vld [vmem:[#allocation2 + $0x8] sm:$0xff]
    %v81 = vld [vmem:[#allocation5] sm:$0xff]
    %v82 = vld [vmem:[#allocation5 + $0x8] sm:$0xff]
    %v83 = vld [vmem:[#allocation7] sm:$0xff]
    %v84 = vld [vmem:[#allocation7 + $0x8] sm:$0xff]
    %v85 = vmul.f32 %v81, %v83
    %v86 = vmul.f32 %v82, %v84
    %v87 = vlog2.pop %v79
    %v88 = vmul.f32 %v87, 0.6931472
    %v89 = vlog2.pop %v80
    %v90 = vmul.f32 %v89, 0.6931472
    %v91 = vmax.f32 %v88, -100.0
    %v92 = vmax.f32 %v90, -100.0
    %v93 = vsub.f32 0.0, %v79
    %v94 = vsub.f32 0.0, %v80
    %v95 = vadd.f32 %v93, 1.0
    %v96 = vlog2.pop %v95
    %v97 = vmul.f32 %v96, 0.6931472
    %v98 = vmul.f32 -0.5, %v93
    %v99 = vadd.f32 %v98, 1.0
    %v100 = vmul.f32 %v99, %v93
    %v101 = vand.u32 2147483647, %v93
    %vm102 = vcmp.lt.f32.partialorder %v101, 0.0004427343
    %v103 = vsel %vm102, %v100, %v97
    %v104 = vadd.f32 %v94, 1.0
    %v105 = vlog2.pop %v104
    %v106 = vmul.f32 %v105, 0.6931472
    %v107 = vmul.f32 -0.5, %v94
    %v108 = vadd.f32 %v107, 1.0
    %v109 = vmul.f32 %v108, %v94
    %v110 = vand.u32 2147483647, %v94
    %vm111 = vcmp.lt.f32.partialorder %v110, 0.0004427343
    %v112 = vsel %vm111, %v109, %v106
    %v113 = vmax.f32 %v103, -100.0
    %v114 = vmax.f32 %v112, -100.0
    %v115 = vsub.f32 %v91, %v113
    %v116 = vsub.f32 %v92, %v114
    %v117 = vmul.f32 %v85, %v115
    %v118 = vmul.f32 %v86, %v116
    %v119 = vadd.f32 %v113, %v117
    %v120 = vadd.f32 %v114, %v118
    %v121 = vsub.f32 0.0, %v119
    %v122 = vsub.f32 0.0, %v120
    %v123 = vld [vmem:[#allocation8] sm:$0xff]
    %v124 = vadd.f32 %v121, %v122
    %v125 = vadd.f32 %v123, %v124
    %126 = vst [vmem:[#allocation8] sm:$0xff] %v125
    // Predicated region
    $region30: #{tpu_custom_call.1} parent=1 // pred_check
      _
    $region31: #{tpu_custom_call.1} parent=1 // pred_check_branch
      %128 = sbr.rel (0) target = $region33
    $region32: #{tpu_custom_call.1} parent=1 // pred_region
      %s130 = ssub.s32 128, 128
      %131 = vsyncadd [#allocation4], %s130
      %s133 = sshll.u32 [#allocation8], 4
      %s134 = int_to_ptr.vmem [resolvable:$true] %s133
      %136 = dma.vmem_to_hbm [thread:$0]  %s134, 128, %s3, [#allocation4]
    $region33: #{tpu_custom_call.1} parent=1 // pred_fallthru
      _
    // Predicated region
    $region34: #{tpu_custom_call.1} parent=1 // pred_check
      _
    $region35: #{tpu_custom_call.1} parent=1 // pred_check_branch
      %138 = sbr.rel (0) target = $region37
    $region36: #{tpu_custom_call.1} parent=1 // pred_region
      %139 = dma.done [#allocation4], 128
    $region37: #{tpu_custom_call.1} parent=1 // pred_fallthru
      _
    %140 = vsyncpa [#allocation3], 1
    %141 = vsyncpa [#allocation6], 1
    %142 = vsyncpa [#allocation4], 1

</llo_original>
